<compile_context>
chip_gen: v5e
topology: v5e:2x2
jax: 0.10.0
libtpu: 0.0.40
codegen_flags: <defaults>
</compile_context>

<pallas_src>
import math

import jax
import jax.numpy as jnp
from jax import lax
from jax.experimental import pallas as pl
from jax.experimental.pallas import tpu as pltpu


def _round_up(x: int, m: int) -> int:
    return ((x + m - 1) // m) * m


# ---------------------------------------------------------------------------
# Kernel
# ---------------------------------------------------------------------------
def _make_kernel(n_head_layers, has_gamma, has_beta, c_out_pad, scale_mode,
                 activation, tb):
    """Fused conv + bias + activation + context-MLP + FiLM/scale modulation.

    Per grid step (a tile of `tb` samples) the kernel sees:
      patches_ref : (tb, K, P_pad)        im2col patches, conv dtype
      conv_w_ref  : (C_out_pad, K)        resident
      conv_b_ref  : (C_out_pad, 1)  f32   resident
      c_ref       : (1, ctx, tb)    f32   per-step context columns (optional)
      head refs   : fused/padded f32 weights, torch (out, in) layout, resident
      o_ref       : (tb, C_out_pad, P_pad)
    """
    use_ctx = (has_gamma or has_beta) and n_head_layers > 0

    def kernel(*refs):
        patches_ref, conv_w_ref, conv_b_ref = refs[0], refs[1], refs[2]
        pos = 3
        c_ref = None
        head_refs = ()
        if use_ctx:
            c_ref = refs[pos]
            pos += 1
            head_refs = refs[pos:pos + n_head_layers]
            pos += n_head_layers
        o_ref = refs[pos]

        gamma = None
        beta = None
        if use_ctx:
            # Context MLP: batched over the tb samples of this step (N = tb)
            # and fused across the gamma/beta heads -> one small f32 GEMM
            # chain per step.  Linear -> ReLU -> ... -> Linear, torch-layout
            # weights used as-is (no transposes).
            h = c_ref[0]                                      # (ctx, tb) f32
            for li in range(n_head_layers):
                if li > 0:
                    h = jnp.maximum(h, 0.0)                   # ReLU
                h = lax.dot_general(
                    head_refs[li][...], h,
                    dimension_numbers=(((1,), (0,)), ((), ())),
                    preferred_element_type=jnp.float32)
            if has_gamma and has_beta:
                gamma, beta = h[:c_out_pad], h[c_out_pad:]    # (C_out_pad, tb) each
            elif has_gamma:
                gamma = h
            else:
                beta = h
            if gamma is not None and scale_mode == "film":
                gamma = gamma + 1.0                           # hoisted fold

        # Convolution as one MXU GEMM per sample: (C_out_pad, K) @ (K, P_pad)
        # with f32 accumulation.  P_pad is a multiple of 128 -> lane-dense
        # loads/stores, no masked vst.
        for t in range(tb):                                    # static unroll
            acc = lax.dot_general(
                conv_w_ref[...], patches_ref[t],
                dimension_numbers=(((1,), (0,)), ((), ())),
                preferred_element_type=jnp.float32)            # (C_out_pad, P_pad)
            acc = acc + conv_b_ref[...]                        # f32 bias broadcast
            if activation is not None:
                acc = activation(acc)
            if gamma is not None:
                acc = acc * gamma[:, t:t + 1]
            if beta is not None:
                acc = acc + beta[:, t:t + 1]
            o_ref[t] = acc.astype(o_ref.dtype)

    return kernel


# ---------------------------------------------------------------------------
# One-time param packing (done ONCE, outside the per-call path)
# ---------------------------------------------------------------------------
def pack_params_for_pallas(params):
    """Repack torch-layout params into kernel-ready layouts:
       * conv weight rows zero-padded to a sublane multiple (8 f32 / 16 bf16),
       * conv bias stored as f32 (C_out_pad, 1),
       * gamma/beta heads kept in f32 and fused into a single MLP
         (layer 0: row-concat over the shared input, deeper layers:
          block-diagonal), final-layer rows padded to C_out_pad."""
    conv_w = params["conv_w"]
    conv_b = params["conv_b"].astype(jnp.float32)
    C_out, _ = conv_w.shape
    sub = 16 if conv_w.dtype.itemsize == 2 else 8
    C_out_pad = _round_up(C_out, sub)
    conv_w_p = jnp.pad(conv_w, ((0, C_out_pad - C_out), (0, 0)))
    conv_b_p = jnp.pad(conv_b.reshape(C_out, 1), ((0, C_out_pad - C_out), (0, 0)))

    def prep(ws):
        ws = [w.astype(jnp.float32) for w in ws]
        if ws:
            last = ws[-1]
            ws[-1] = jnp.pad(last, ((0, C_out_pad - last.shape[0]), (0, 0)))
        return ws

    gws = prep(list(params.get("gamma_w", [])))
    bws = prep(list(params.get("beta_w", [])))

    if gws and bws:
        assert len(gws) == len(bws), "gamma/beta heads must share h_dim"
        head_ws = []
        for li, (wg, wb) in enumerate(zip(gws, bws)):
            if li == 0:                          # shared input c: plain row concat
                head_ws.append(jnp.concatenate([wg, wb], axis=0))
            else:                                # independent hiddens: block diag
                og, ig = wg.shape
                ob, ib = wb.shape
                blk = jnp.zeros((og + ob, ig + ib), jnp.float32)
                blk = blk.at[:og, :ig].set(wg)
                blk = blk.at[og:, ig:].set(wb)
                head_ws.append(blk)
        has_gamma, has_beta = True, True
    elif gws:
        head_ws, has_gamma, has_beta = gws, True, False
    elif bws:
        head_ws, has_gamma, has_beta = bws, False, True
    else:
        head_ws, has_gamma, has_beta = [], False, False

    return dict(conv_w=conv_w_p, conv_b=conv_b_p, head_w=head_ws,
                has_gamma=has_gamma, has_beta=has_beta,
                c_out=C_out, c_out_pad=C_out_pad)


# ---------------------------------------------------------------------------
# Wrapper
# ---------------------------------------------------------------------------
def _im2col_nchw(x, kernel_size, stride, padding):
    """(B, C, H, W) -> (B, C*KH*KW, Ho*Wo); feature index = ci*KH*KW + kh*KW + kw."""
    KH, KW = kernel_size
    if padding:
        x = jnp.pad(x, ((0, 0), (0, 0), (padding, padding), (padding, padding)))
    B, C, H, W = x.shape
    Ho = (H - KH) // stride + 1
    Wo = (W - KW) // stride + 1
    cols = []
    for kh in range(KH):
        for kw in range(KW):
            cols.append(x[:, :,
                          kh:kh + stride * (Ho - 1) + 1:stride,
                          kw:kw + stride * (Wo - 1) + 1:stride])
    patches = jnp.stack(cols, axis=2)              # (B, C, KH*KW, Ho, Wo)
    return patches.reshape(B, C * KH * KW, Ho * Wo)


def contextual_conv2d_pallas(packed, x, c=None, *, kernel_size, stride=1,
                             padding=0, activation=None, scale_mode="scale",
                             batch_tile=8):
    """ContextualConv2d.forward(x, c).  x: (B, C_in, H, W), c: (B, ctx) or None."""
    conv_w = packed["conv_w"]                      # (C_out_pad, K)
    conv_b = packed["conv_b"]                      # (C_out_pad, 1) f32
    head_ws = list(packed["head_w"])
    C_out = packed["c_out"]
    C_out_pad, K = conv_w.shape
    KH, KW = kernel_size
    B, C_in, H, W = x.shape
    assert C_in * KH * KW == K

    Ho = (H + 2 * padding - KH) // stride + 1
    Wo = (W + 2 * padding - KW) // stride + 1
    P = Ho * Wo
    P_pad = _round_up(P, 128)                      # lane-dense output stores

    use_ctx = (c is not None) and bool(head_ws) and \
        (packed["has_gamma"] or packed["has_beta"])
    has_gamma = packed["has_gamma"] and use_ctx
    has_beta = packed["has_beta"] and use_ctx

    in_dtype = conv_w.dtype
    out_dtype = jnp.promote_types(x.dtype, in_dtype)
    in_bytes = jnp.dtype(in_dtype).itemsize
    out_bytes = jnp.dtype(out_dtype).itemsize

    # ---- batch tiling: tb samples per grid step ----
    per_sample_tile = K * P_pad * in_bytes + C_out_pad * P_pad * out_bytes
    tb = max(1, min(batch_tile, B, (12 << 20) // max(per_sample_tile, 1)))
    if B >= 2 and pl.cdiv(B, tb) < 2:              # keep >=2 steps for megacore
        tb = pl.cdiv(B, 2)
    n_steps = pl.cdiv(B, tb)
    B_pad = n_steps * tb

    # im2col in the wrapper (materialized in HBM across the custom-call
    # boundary; see TODO at top for the direct-conv v5e variant).
    patches = _im2col_nchw(x.astype(in_dtype), (KH, KW), stride, padding)
    patches = jnp.pad(patches, ((0, B_pad - B), (0, 0), (0, P_pad - P)))

    kernel = _make_kernel(len(head_ws) if use_ctx else 0, has_gamma, has_beta,
                          C_out_pad, scale_mode, activation, tb)

    inputs = [patches, conv_w, conv_b]
    in_specs = [
        pl.BlockSpec((tb, K, P_pad), lambda i: (i, 0, 0)),       # per-step tile
        pl.BlockSpec((C_out_pad, K), lambda i: (0, 0)),          # resident
        pl.BlockSpec((C_out_pad, 1), lambda i: (0, 0)),          # resident (f32)
    ]
    if use_ctx:
        ctx_dim = c.shape[1]
        c_f = jnp.pad(c.astype(jnp.float32), ((0, B_pad - B), (0, 0)))
        # pre-chunk per step so blocks cover full trailing dims: (steps, ctx, tb)
        c_chunks = c_f.reshape(n_steps, tb, ctx_dim).transpose(0, 2, 1)
        inputs.append(c_chunks)
        in_specs.append(pl.BlockSpec((1, ctx_dim, tb), lambda i: (i, 0, 0)))
        for w in head_ws:                                        # fused, f32, resident
            inputs.append(w)
            in_specs.append(pl.BlockSpec(w.shape, lambda i: (0, 0)))

    head_flops = (2 * sum(int(w.shape[0]) * int(w.shape[1]) for w in head_ws)
                  if use_ctx else 0)
    cost = pl.CostEstimate(
        flops=int(2 * B_pad * C_out_pad * K * P_pad + B_pad * head_flops),
        transcendentals=0,
        bytes_accessed=int(B_pad * K * P_pad * in_bytes
                           + B_pad * C_out_pad * P_pad * out_bytes
                           + int(conv_w.size) * in_bytes + int(conv_b.size) * 4
                           + sum(int(w.size) * 4 for w in head_ws)
                           + (B_pad * c.shape[1] * 4 if use_ctx else 0)))

    # VMEM: 2x double-buffered per-step tiles + resident weights.  Only raise
    # the scoped limit beyond the 32 MiB default when actually needed.
    est_vmem = (2 * tb * (K * P_pad * in_bytes + C_out_pad * P_pad * out_bytes)
                + int(conv_w.size) * in_bytes + int(conv_b.size) * 4
                + sum(int(w.size) * 4 for w in head_ws) + (2 << 20))
    cp_kwargs = dict(dimension_semantics=("parallel",))
    if est_vmem > (32 << 20):
        cp_kwargs["vmem_limit_bytes"] = int(min(est_vmem, 100 << 20))

    out = pl.pallas_call(
        kernel,
        out_shape=jax.ShapeDtypeStruct((B_pad, C_out_pad, P_pad), out_dtype),
        grid=(n_steps,),
        in_specs=in_specs,
        out_specs=pl.BlockSpec((tb, C_out_pad, P_pad), lambda i: (i, 0, 0)),
        compiler_params=pltpu.CompilerParams(**cp_kwargs),
        cost_estimate=cost,
    )(*inputs)

    return out[:B, :C_out, :P].reshape(B, C_out, Ho, Wo)


# ---------------------------------------------------------------------------
# Param init (torch-equivalent layouts/initialization)
# ---------------------------------------------------------------------------
def init_contextual_conv2d_params(key, in_channels, out_channels, kernel_size, *,
                                  context_dim=None, h_dim=None,
                                  use_scale=False, use_bias=True,
                                  scale_mode="scale", identity_gamma_init=True,
                                  param_dtype=jnp.float32):
    KH, KW = kernel_size if isinstance(kernel_size, (tuple, list)) else (kernel_size, kernel_size)
    K = in_channels * KH * KW
    k_cw, k_cb, k_gamma, k_beta = jax.random.split(key, 4)

    bound = 1.0 / math.sqrt(K)
    conv_w = jax.random.uniform(k_cw, (out_channels, K), jnp.float32, -bound, bound)
    conv_b = jax.random.uniform(k_cb, (out_channels, 1), jnp.float32, -bound, bound)

    def head_dims():
        if h_dim is None or (isinstance(h_dim, int) and h_dim <= 0):
            return [(context_dim, out_channels)]
        hidden = list(h_dim) if isinstance(h_dim, (list, tuple)) else [h_dim]
        dims, d = [], context_dim
        for h in hidden:
            dims.append((d, h))
            d = h
        dims.append((d, out_channels))
        return dims

    def init_head(k):
        ws = []
        for din, dout in head_dims():
            k, sub = jax.random.split(k)
            b = 1.0 / math.sqrt(din)
            ws.append(jax.random.uniform(sub, (dout, din), jnp.float32, -b, b))
        return ws

    params = {
        "conv_w": conv_w.astype(param_dtype),
        "conv_b": conv_b.astype(param_dtype),
        "gamma_w": [],
        "beta_w": [],
    }
    if context_dim is not None and context_dim > 0:
        if use_scale:
            gws = init_head(k_gamma)
            if identity_gamma_init:   # mirrors _init_gamma_weights
                gws[-1] = (jnp.zeros_like(gws[-1]) if scale_mode == "film"
                           else jnp.ones_like(gws[-1]))
            params["gamma_w"] = [w.astype(param_dtype) for w in gws]
        if use_bias:
            params["beta_w"] = [w.astype(param_dtype) for w in init_head(k_beta)]
    return params


# ---------------------------------------------------------------------------
# Pure-JAX reference (independent of the Pallas path)
# ---------------------------------------------------------------------------
def contextual_conv2d_ref(params, x, c, *, in_channels, kernel_size, stride=1,
                          padding=0, activation=None, scale_mode="scale"):
    KH, KW = kernel_size
    w4 = params["conv_w"].astype(jnp.float32).reshape(-1, in_channels, KH, KW)
    feats = lax.conv_general_dilated(
        x.astype(jnp.float32), w4, (stride, stride),
        [(padding, padding), (padding, padding)],
        dimension_numbers=("NCHW", "OIHW", "NCHW"),
        precision=lax.Precision.HIGHEST)
    feats = feats + params["conv_b"].astype(jnp.float32).reshape(1, -1, 1, 1)
    if activation is not None:
        feats = activation(feats)

    def head(ws):
        h = c.astype(jnp.float32)
        for i, w in enumerate(ws):
            h = h @ w.astype(jnp.float32).T
            if i < len(ws) - 1:
                h = jnp.maximum(h, 0.0)
        return h                                       # (B, C_out)

    if c is not None and len(params["gamma_w"]) > 0:
        g = head(params["gamma_w"])[:, :, None, None]
        feats = feats * (1.0 + g) if scale_mode == "film" else feats * g
    if c is not None and len(params["beta_w"]) > 0:
        feats = feats + head(params["beta_w"])[:, :, None, None]
    return feats


# ---------------------------------------------------------------------------
# Demo / correctness check
# ---------------------------------------------------------------------------
if __name__ == "__main__":
    key = jax.random.PRNGKey(0)
    k_x, k_c, k_p1, k_p2, k_p5 = jax.random.split(key, 5)

    B, C_in, H, W = 2, 4, 16, 16
    C_out, KH, KW = 8, 3, 3
    context_dim, h_dim = 16, 32

    x = jax.random.normal(k_x, (B, C_in, H, W), jnp.float32)
    c = jax.random.normal(k_c, (B, context_dim), jnp.float32)

    TOL = dict(atol=2e-2, rtol=2e-2)   # covers MXU low-precision f32 paths

    # 1) Module defaults: beta head only (use_bias=True), MLP 16->32->8,
    #    scale_mode='scale', no activation; jitted wrapper.
    p1 = init_contextual_conv2d_params(
        k_p1, C_in, C_out, (KH, KW), context_dim=context_dim, h_dim=h_dim,
        use_scale=False, use_bias=True)
    pk1 = pack_params_for_pallas(p1)
    fwd1 = jax.jit(lambda xx, cc: contextual_conv2d_pallas(
        pk1, xx, cc, kernel_size=(KH, KW)))
    out1 = jax.block_until_ready(fwd1(x, c))
    ref1 = contextual_conv2d_ref(p1, x, c, in_channels=C_in, kernel_size=(KH, KW))
    assert out1.shape == (B, C_out, H - KH + 1, W - KW + 1)
    assert jnp.allclose(out1, ref1, **TOL)

    # 2) FiLM: gamma + beta heads (single Linear each, fused by row-concat),
    #    ReLU activation, stride=2, padding=1 (random gamma init).
    relu = lambda t: jnp.maximum(t, 0.0)
    p2 = init_contextual_conv2d_params(
        k_p2, C_in, C_out, (KH, KW), context_dim=context_dim, h_dim=None,
        use_scale=True, use_bias=True, scale_mode="film",
        identity_gamma_init=False)
    pk2 = pack_params_for_pallas(p2)
    out2 = jax.block_until_ready(contextual_conv2d_pallas(
        pk2, x, c, kernel_size=(KH, KW), stride=2, padding=1,
        activation=relu, scale_mode="film"))
    ref2 = contextual_conv2d_ref(
        p2, x, c, in_channels=C_in, kernel_size=(KH, KW), stride=2, padding=1,
        activation=relu, scale_mode="film")
    assert out2.shape == ref2.shape
    assert jnp.allclose(out2, ref2, **TOL)

    # 3) bf16 params + activations (MXU-native conv, f32 head, bf16 output).
    p3 = jax.tree_util.tree_map(lambda a: a.astype(jnp.bfloat16), p1)
    pk3 = pack_params_for_pallas(p3)
    x_bf, c_bf = x.astype(jnp.bfloat16), c.astype(jnp.bfloat16)
    out3 = jax.block_until_ready(contextual_conv2d_pallas(
        pk3, x_bf, c_bf, kernel_size=(KH, KW)))
    assert out3.dtype == jnp.bfloat16
    ref3 = contextual_conv2d_ref(p3, x_bf, c_bf, in_channels=C_in,
                                 kernel_size=(KH, KW))
    assert jnp.allclose(out3.astype(jnp.float32), ref3, **TOL)

    # 4) No context (c=None): plain conv + bias path.
    out4 = jax.block_until_ready(contextual_conv2d_pallas(
        pk1, x, None, kernel_size=(KH, KW)))
    ref4 = contextual_conv2d_ref(p1, x, None, in_channels=C_in,
                                 kernel_size=(KH, KW))
    assert jnp.allclose(out4, ref4, **TOL)

    # 5) Both heads with hidden layer (exercises block-diagonal head fusion),
    #    scale mode with identity gamma init.
    p5 = init_contextual_conv2d_params(
        k_p5, C_in, C_out, (KH, KW), context_dim=context_dim, h_dim=h_dim,
        use_scale=True, use_bias=True, scale_mode="scale")
    pk5 = pack_params_for_pallas(p5)
    out5 = jax.block_until_ready(contextual_conv2d_pallas(
        pk5, x, c, kernel_size=(KH, KW), scale_mode="scale"))
    ref5 = contextual_conv2d_ref(p5, x, c, in_channels=C_in,
                                 kernel_size=(KH, KW), scale_mode="scale")
    assert jnp.allclose(out5, ref5, **TOL)

    print("KERNEL_OK")
</pallas_src>

<mosaic_0001>
module attributes {stable_mosaic.version = 11 : i64} {
  func.func @kernel(%arg0: i32, %arg1: memref<1x36x256xf32, #tpu.memory_space<vmem>>, %arg2: memref<8x36xf32, #tpu.memory_space<vmem>>, %arg3: memref<8x1xf32, #tpu.memory_space<vmem>>, %arg4: memref<1x16x1xf32, #tpu.memory_space<vmem>>, %arg5: memref<32x16xf32, #tpu.memory_space<vmem>>, %arg6: memref<8x32xf32, #tpu.memory_space<vmem>>, %arg7: memref<1x8x256xf32, #tpu.memory_space<vmem>>) attributes {dimension_semantics = [#tpu.dimension_semantics<parallel>], iteration_bounds = array<i64: 2>, scalar_prefetch = 0 : i64, scratch_operands = 0 : i64, tpu.core_type = #tpu.core_type<tc>, window_params = [{transform_indices = @transform_0, window_bounds = array<i64: 1, 36, 256>}, {pipeline_mode = #tpu.pipeline_mode<synchronous>, transform_indices = @transform_1, window_bounds = array<i64: 8, 36>}, {pipeline_mode = #tpu.pipeline_mode<synchronous>, transform_indices = @transform_2, window_bounds = array<i64: 8, 1>}, {transform_indices = @transform_3, window_bounds = array<i64: 1, 16, 1>}, {pipeline_mode = #tpu.pipeline_mode<synchronous>, transform_indices = @transform_4, window_bounds = array<i64: 32, 16>}, {pipeline_mode = #tpu.pipeline_mode<synchronous>, transform_indices = @transform_5, window_bounds = array<i64: 8, 32>}, {transform_indices = @transform_6, window_bounds = array<i64: 1, 8, 256>}]} {
    %c0 = arith.constant 0 : index
    %c0_0 = arith.constant 0 : index
    %c0_1 = arith.constant 0 : index
    %0 = vector.load %arg4[%c0, %c0_0, %c0_1] : memref<1x16x1xf32, #tpu.memory_space<vmem>>, vector<1x16x1xf32>
    %1 = vector.shape_cast %0 : vector<1x16x1xf32> to vector<16x1xf32>
    %c0_2 = arith.constant 0 : index
    %c0_3 = arith.constant 0 : index
    %2 = vector.load %arg5[%c0_2, %c0_3] : memref<32x16xf32, #tpu.memory_space<vmem>>, vector<32x16xf32>
    %cst = arith.constant dense<0.000000e+00> : vector<32x1xf32>
    %3 = tpu.matmul %2, %1, %cst {dimension_numbers = #tpu.dot_dimension_numbers<[1], [0], [0], [1], [0, 0, 1, 1], [], []>} : vector<32x16xf32>, vector<16x1xf32>, vector<32x1xf32> -> vector<32x1xf32>
    %cst_4 = arith.constant 0.000000e+00 : f32
    %4 = vector.broadcast %cst_4 : f32 to vector<32x1xf32>
    %5 = arith.maximumf %3, %4 : vector<32x1xf32>
    %c0_5 = arith.constant 0 : index
    %c0_6 = arith.constant 0 : index
    %6 = vector.load %arg6[%c0_5, %c0_6] : memref<8x32xf32, #tpu.memory_space<vmem>>, vector<8x32xf32>
    %cst_7 = arith.constant dense<0.000000e+00> : vector<8x1xf32>
    %7 = tpu.matmul %6, %5, %cst_7 {dimension_numbers = #tpu.dot_dimension_numbers<[1], [0], [0], [1], [0, 0, 1, 1], [], []>} : vector<8x32xf32>, vector<32x1xf32>, vector<8x1xf32> -> vector<8x1xf32>
    %c0_8 = arith.constant 0 : index
    %c0_9 = arith.constant 0 : index
    %8 = vector.load %arg2[%c0_8, %c0_9] : memref<8x36xf32, #tpu.memory_space<vmem>>, vector<8x36xf32>
    %c0_10 = arith.constant 0 : index
    %c0_11 = arith.constant 0 : index
    %c0_12 = arith.constant 0 : index
    %9 = vector.load %arg1[%c0_10, %c0_11, %c0_12] : memref<1x36x256xf32, #tpu.memory_space<vmem>>, vector<1x36x256xf32>
    %10 = vector.shape_cast %9 : vector<1x36x256xf32> to vector<36x256xf32>
    %cst_13 = arith.constant dense<0.000000e+00> : vector<8x256xf32>
    %11 = tpu.matmul %8, %10, %cst_13 {dimension_numbers = #tpu.dot_dimension_numbers<[1], [0], [0], [1], [0, 0, 1, 1], [], []>} : vector<8x36xf32>, vector<36x256xf32>, vector<8x256xf32> -> vector<8x256xf32>
    %c0_14 = arith.constant 0 : index
    %c0_15 = arith.constant 0 : index
    %12 = vector.load %arg3[%c0_14, %c0_15] : memref<8x1xf32, #tpu.memory_space<vmem>>, vector<8x1xf32>
    %13 = vector.broadcast %12 : vector<8x1xf32> to vector<8x256xf32>
    %14 = arith.addf %11, %13 : vector<8x256xf32>
    %15 = vector.broadcast %7 : vector<8x1xf32> to vector<8x256xf32>
    %16 = arith.addf %14, %15 : vector<8x256xf32>
    %c0_16 = arith.constant 0 : index
    %c0_17 = arith.constant 0 : index
    %c0_18 = arith.constant 0 : index
    %17 = vector.load %arg7[%c0_16, %c0_17, %c0_18] : memref<1x8x256xf32, #tpu.memory_space<vmem>>, vector<1x8x256xf32>
    %18 = vector.shape_cast %17 : vector<1x8x256xf32> to vector<8x256xf32>
    %19 = vector.shape_cast %16 : vector<8x256xf32> to vector<1x8x256xf32>
    tpu.vector_store %arg7[%c0_16, %c0_17, %c0_18], %19 {strides = array<i32>} : memref<1x8x256xf32, #tpu.memory_space<vmem>>, vector<1x8x256xf32>,
    return
  }
  func.func @transform_0(%arg0: i32) -> (i32, i32, i32) {
    %c0_i32 = arith.constant 0 : i32
    %c0_i32_0 = arith.constant 0 : i32
    %c0_i32_1 = arith.constant 0 : i32
    return %arg0, %c0_i32, %c0_i32_0 : i32, i32, i32
  }
  func.func @transform_1(%arg0: i32) -> (i32, i32) {
    %c0_i32 = arith.constant 0 : i32
    %c0_i32_0 = arith.constant 0 : i32
    %c0_i32_1 = arith.constant 0 : i32
    return %c0_i32, %c0_i32_0 : i32, i32
  }
  func.func @transform_2(%arg0: i32) -> (i32, i32) {
    %c0_i32 = arith.constant 0 : i32
    %c0_i32_0 = arith.constant 0 : i32
    %c0_i32_1 = arith.constant 0 : i32
    return %c0_i32, %c0_i32_0 : i32, i32
  }
  func.func @transform_3(%arg0: i32) -> (i32, i32, i32) {
    %c0_i32 = arith.constant 0 : i32
    %c0_i32_0 = arith.constant 0 : i32
    %c0_i32_1 = arith.constant 0 : i32
    return %arg0, %c0_i32, %c0_i32_0 : i32, i32, i32
  }
  func.func @transform_4(%arg0: i32) -> (i32, i32) {
    %c0_i32 = arith.constant 0 : i32
    %c0_i32_0 = arith.constant 0 : i32
    %c0_i32_1 = arith.constant 0 : i32
    return %c0_i32, %c0_i32_0 : i32, i32
  }
  func.func @transform_5(%arg0: i32) -> (i32, i32) {
    %c0_i32 = arith.constant 0 : i32
    %c0_i32_0 = arith.constant 0 : i32
    %c0_i32_1 = arith.constant 0 : i32
    return %c0_i32, %c0_i32_0 : i32, i32
  }
  func.func @transform_6(%arg0: i32) -> (i32, i32, i32) {
    %c0_i32 = arith.constant 0 : i32
    %c0_i32_0 = arith.constant 0 : i32
    %c0_i32_1 = arith.constant 0 : i32
    return %arg0, %c0_i32, %c0_i32_0 : i32, i32, i32
  }
}

</mosaic_0001>

<llo_original>
// kernel: _lambda_.1
$region0: #{_lambda_.1}
  #allocation0 [shape = 'u32[]', space=smem, size = 0x4, offset = 0x4, fixed_abs, tag = 'smem constant byte address 0x4 - core index']
  #allocation1 [shape = 'u32[72,128]{1,0:T(1,128)}', space=vmem, size = 0x9000, scoped, tag = 'internal scratch']
  %s0 = inlined_call_operand.vmem [shape: f32[2,36,256], index: 0, kind: input, shape index: {}]
  %s1 = inlined_call_operand.vmem [shape: f32[8,36], index: 1, kind: input, shape index: {}]
  %s2 = inlined_call_operand.vmem [shape: f32[8,1], index: 2, kind: input, shape index: {}]
  %s3 = inlined_call_operand.vmem [shape: f32[2,16,1], index: 3, kind: input, shape index: {}]
  %s4 = inlined_call_operand.vmem [shape: f32[32,16], index: 4, kind: input, shape index: {}]
  %s5 = inlined_call_operand.vmem [shape: f32[8,32], index: 5, kind: input, shape index: {}]
  %s6 = inlined_call_operand.vmem [shape: f32[2,8,256], index: 6, kind: output, shape index: {}]
  %s7 = sld [smem:[#allocation0]]
  $region57: #{_lambda_.1} parent=0
    _
  %s9 = ssub.s32 1, %s7
  %s10 = scalar_select 0, %s9, %s7
  loop: start=0, step=1, limit=4
  $region2: #{_lambda_.1} parent=0 // loop_pre_header
    _
  $region3: #{_lambda_.1} parent=0 // loop_header
    %s12 = sphi 0, %s16
    %p13 = scmp.ge.s32.totalorder %s12, 4
    %s22 = sphi 0, %s24
    %s25 = sphi 0, %s22
    %s26 = sphi 0, %s25
    %s42 = sphi 0, %s26
    %s46 = sphi 0, %s46
    %s48 = sphi 0, %s46
    %s49 = sphi 0, %s48
    %s63 = sphi 0, %s49
    %s67 = sphi 0, %s67
    %s69 = sphi 0, %s67
    %s70 = sphi 0, %s69
    %s84 = sphi 0, %s70
    %s90 = sphi 0, %s92
    %s93 = sphi 0, %s90
    %s94 = sphi 0, %s93
    %s110 = sphi 0, %s94
    %s114 = sphi 0, %s114
    %s116 = sphi 0, %s114
    %s117 = sphi 0, %s116
    %s131 = sphi 0, %s117
    %s135 = sphi 0, %s135
    %s137 = sphi 0, %s135
    %s138 = sphi 0, %s137
    %s152 = sphi 0, %s138
    %s158 = sphi 0, %s160
    %s161 = sphi 0, %s158
    %s162 = sphi 0, %s161
    %s178 = sphi 0, %s162
  $region4: #{_lambda_.1} parent=0 // loop_header_branch
    %15 = sbr.rel (%p13) target = $region8
  $region5: #{_lambda_.1} parent=0 // loop_body
    %s17 = ssub.s32 %s12, 1
    %s18 = ssub.s32 %s12, 2
    %s19 = sadd.s32 %s12, 1
    %s20 = ssub.s32 %s12, %s19
    %p21 = scmp.eq.s32.totalorder %s20, 0
    %s23 = sadd.s32 %s22, 1
    %s24 = scalar_select %p21, %s22, %s23
    %p27 = pneg %p21
    %p28 = scmp.eq.s32.totalorder %s12, 1
    %p29 = por %p27, %p28
    %p30 = scmp.ne.s32.totalorder %s22, %s25
    %p31 = scmp.eq.s32.totalorder %s12, 0
    %p32 = por %p30, %p31
    %p33 = scmp.ne.s32.totalorder %s22, %s25
    %p34 = scmp.eq.s32.totalorder %s17, 1
    %p35 = por %p33, %p34
    %p36 = scmp.ne.s32.totalorder %s25, %s26
    %p37 = scmp.eq.s32.totalorder %s17, 0
    %p38 = por %p36, %p37
    %p39 = scmp.ne.s32.totalorder %s25, %s26
    %p40 = scmp.eq.s32.totalorder %s18, 1
    %p41 = por %p39, %p40
    %p43 = scmp.ne.s32.totalorder %s26, %s42
    %p44 = scmp.eq.s32.totalorder %s18, 0
    %p45 = por %p43, %p44
    %s47 = sadd.s32 %s46, 1
    %p50 = scmp.eq.s32.totalorder %s12, 1
    %p51 = scmp.ne.s32.totalorder %s46, %s48
    %p52 = scmp.eq.s32.totalorder %s12, 0
    %p53 = por %p51, %p52
    %p54 = scmp.ne.s32.totalorder %s46, %s48
    %p55 = scmp.eq.s32.totalorder %s17, 1
    %p56 = por %p54, %p55
    %p57 = scmp.ne.s32.totalorder %s48, %s49
    %p58 = scmp.eq.s32.totalorder %s17, 0
    %p59 = por %p57, %p58
    %p60 = scmp.ne.s32.totalorder %s48, %s49
    %p61 = scmp.eq.s32.totalorder %s18, 1
    %p62 = por %p60, %p61
    %p64 = scmp.ne.s32.totalorder %s49, %s63
    %p65 = scmp.eq.s32.totalorder %s18, 0
    %p66 = por %p64, %p65
    %s68 = sadd.s32 %s67, 1
    %p71 = scmp.eq.s32.totalorder %s12, 1
    %p72 = scmp.ne.s32.totalorder %s67, %s69
    %p73 = scmp.eq.s32.totalorder %s12, 0
    %p74 = por %p72, %p73
    %p75 = scmp.ne.s32.totalorder %s67, %s69
    %p76 = scmp.eq.s32.totalorder %s17, 1
    %p77 = por %p75, %p76
    %p78 = scmp.ne.s32.totalorder %s69, %s70
    %p79 = scmp.eq.s32.totalorder %s17, 0
    %p80 = por %p78, %p79
    %p81 = scmp.ne.s32.totalorder %s69, %s70
    %p82 = scmp.eq.s32.totalorder %s18, 1
    %p83 = por %p81, %p82
    %p85 = scmp.ne.s32.totalorder %s70, %s84
    %p86 = scmp.eq.s32.totalorder %s18, 0
    %p87 = por %p85, %p86
    %s88 = ssub.s32 %s12, %s19
    %p89 = scmp.eq.s32.totalorder %s88, 0
    %s91 = sadd.s32 %s90, 1
    %s92 = scalar_select %p89, %s90, %s91
    %p95 = pneg %p89
    %p96 = scmp.eq.s32.totalorder %s12, 1
    %p97 = por %p95, %p96
    %p98 = scmp.ne.s32.totalorder %s90, %s93
    %p99 = scmp.eq.s32.totalorder %s12, 0
    %p100 = por %p98, %p99
    %p101 = scmp.ne.s32.totalorder %s90, %s93
    %p102 = scmp.eq.s32.totalorder %s17, 1
    %p103 = por %p101, %p102
    %p104 = scmp.ne.s32.totalorder %s93, %s94
    %p105 = scmp.eq.s32.totalorder %s17, 0
    %p106 = por %p104, %p105
    %p107 = scmp.ne.s32.totalorder %s93, %s94
    %p108 = scmp.eq.s32.totalorder %s18, 1
    %p109 = por %p107, %p108
    %p111 = scmp.ne.s32.totalorder %s94, %s110
    %p112 = scmp.eq.s32.totalorder %s18, 0
    %p113 = por %p111, %p112
    %s115 = sadd.s32 %s114, 1
    %p118 = scmp.eq.s32.totalorder %s12, 1
    %p119 = scmp.ne.s32.totalorder %s114, %s116
    %p120 = scmp.eq.s32.totalorder %s12, 0
    %p121 = por %p119, %p120
    %p122 = scmp.ne.s32.totalorder %s114, %s116
    %p123 = scmp.eq.s32.totalorder %s17, 1
    %p124 = por %p122, %p123
    %p125 = scmp.ne.s32.totalorder %s116, %s117
    %p126 = scmp.eq.s32.totalorder %s17, 0
    %p127 = por %p125, %p126
    %p128 = scmp.ne.s32.totalorder %s116, %s117
    %p129 = scmp.eq.s32.totalorder %s18, 1
    %p130 = por %p128, %p129
    %p132 = scmp.ne.s32.totalorder %s117, %s131
    %p133 = scmp.eq.s32.totalorder %s18, 0
    %p134 = por %p132, %p133
    %s136 = sadd.s32 %s135, 1
    %p139 = scmp.eq.s32.totalorder %s12, 1
    %p140 = scmp.ne.s32.totalorder %s135, %s137
    %p141 = scmp.eq.s32.totalorder %s12, 0
    %p142 = por %p140, %p141
    %p143 = scmp.ne.s32.totalorder %s135, %s137
    %p144 = scmp.eq.s32.totalorder %s17, 1
    %p145 = por %p143, %p144
    %p146 = scmp.ne.s32.totalorder %s137, %s138
    %p147 = scmp.eq.s32.totalorder %s17, 0
    %p148 = por %p146, %p147
    %p149 = scmp.ne.s32.totalorder %s137, %s138
    %p150 = scmp.eq.s32.totalorder %s18, 1
    %p151 = por %p149, %p150
    %p153 = scmp.ne.s32.totalorder %s138, %s152
    %p154 = scmp.eq.s32.totalorder %s18, 0
    %p155 = por %p153, %p154
    %s156 = ssub.s32 %s12, %s19
    %p157 = scmp.eq.s32.totalorder %s156, 0
    %s159 = sadd.s32 %s158, 1
    %s160 = scalar_select %p157, %s158, %s159
    %p163 = pneg %p157
    %p164 = scmp.eq.s32.totalorder %s12, 1
    %p165 = por %p163, %p164
    %p166 = scmp.ne.s32.totalorder %s158, %s161
    %p167 = scmp.eq.s32.totalorder %s12, 0
    %p168 = por %p166, %p167
    %p169 = scmp.ne.s32.totalorder %s158, %s161
    %p170 = scmp.eq.s32.totalorder %s17, 1
    %p171 = por %p169, %p170
    %p172 = scmp.ne.s32.totalorder %s161, %s162
    %p173 = scmp.eq.s32.totalorder %s17, 0
    %p174 = por %p172, %p173
    %p175 = scmp.ne.s32.totalorder %s161, %s162
    %p176 = scmp.eq.s32.totalorder %s18, 1
    %p177 = por %p175, %p176
    %p179 = scmp.ne.s32.totalorder %s162, %s178
    %p180 = scmp.eq.s32.totalorder %s18, 0
    %p181 = por %p179, %p180
    %p182 = scmp.le.s32.totalorder 1, %s12
    %p183 = scmp.lt.s32.totalorder %s12, 3
    %p184 = pnand %p182, %p183
    %p185 = pneg %p184
    // Predicated region
    $region9: #{_lambda_.1} parent=5 // pred_check
      _
    $region10: #{_lambda_.1} parent=5 // pred_check_branch
      %187 = sbr.rel (%p184) target = $region12
    $region11: #{_lambda_.1} parent=5 // pred_region
      %s188 = ssub.s32 %s12, 1
      // Predicated region
      $region13: #{_lambda_.1} parent=11 // pred_check
        %p189 = pneg %p59
      $region14: #{_lambda_.1} parent=11 // pred_check_branch
        %191 = sbr.rel (%p189) target = $region16
      $region15: #{_lambda_.1} parent=11 // pred_region
        _
      $region16: #{_lambda_.1} parent=11 // pred_fallthru
        _
      // Predicated region
      $region17: #{_lambda_.1} parent=11 // pred_check
        %p192 = pneg %p80
      $region18: #{_lambda_.1} parent=11 // pred_check_branch
        %194 = sbr.rel (%p192) target = $region20
      $region19: #{_lambda_.1} parent=11 // pred_region
        _
      $region20: #{_lambda_.1} parent=11 // pred_fallthru
        _
      // Predicated region
      $region21: #{_lambda_.1} parent=11 // pred_check
        %p195 = pneg %p127
      $region22: #{_lambda_.1} parent=11 // pred_check_branch
        %197 = sbr.rel (%p195) target = $region24
      $region23: #{_lambda_.1} parent=11 // pred_region
        _
      $region24: #{_lambda_.1} parent=11 // pred_fallthru
        _
      // Predicated region
      $region25: #{_lambda_.1} parent=11 // pred_check
        %p198 = pneg %p148
      $region26: #{_lambda_.1} parent=11 // pred_check_branch
        %200 = sbr.rel (%p198) target = $region28
      $region27: #{_lambda_.1} parent=11 // pred_region
        _
      $region28: #{_lambda_.1} parent=11 // pred_fallthru
        _
    $region12: #{_lambda_.1} parent=5 // pred_fallthru
      _
    %p201 = scmp.lt.s32.totalorder %s12, 2
    // Predicated region
    $region29: #{_lambda_.1} parent=5 // pred_check
      %p202 = pneg %p201
    $region30: #{_lambda_.1} parent=5 // pred_check_branch
      %204 = sbr.rel (%p202) target = $region32
    $region31: #{_lambda_.1} parent=5 // pred_region
      // Predicated region
      $region33: #{_lambda_.1} parent=31 // pred_check
        %p205 = pneg %p32
      $region34: #{_lambda_.1} parent=31 // pred_check_branch
        %207 = sbr.rel (%p205) target = $region36
      $region35: #{_lambda_.1} parent=31 // pred_region
        %p208 = scmp.lt.s32.totalorder %s12, 1
        %s209 = scalar_select %p208, %s12, 1
        %s210 = smul.addr %s209, 10
        %s211 = smul.addr %s210, 8
        %s212 = scalar_lea.vmem %s0, %s211
      $region36: #{_lambda_.1} parent=31 // pred_fallthru
        _
      // Predicated region
      $region37: #{_lambda_.1} parent=31 // pred_check
        %p213 = pneg %p100
      $region38: #{_lambda_.1} parent=31 // pred_check_branch
        %215 = sbr.rel (%p213) target = $region40
      $region39: #{_lambda_.1} parent=31 // pred_region
        %p216 = scmp.lt.s32.totalorder %s12, 1
        %s217 = scalar_select %p216, %s12, 1
        %s218 = smul.addr %s217, 2
        %s219 = smul.addr %s218, 8
        %s220 = scalar_lea.vmem %s3, %s219
      $region40: #{_lambda_.1} parent=31 // pred_fallthru
        _
    $region32: #{_lambda_.1} parent=5 // pred_fallthru
      _
    %p221 = scmp.le.s32.totalorder 1, %s12
    %p222 = scmp.lt.s32.totalorder %s12, 3
    %p223 = pnand %p221, %p222
    %p224 = pneg %p223
    // Predicated region
    $region41: #{_lambda_.1} parent=5 // pred_check
      _
    $region42: #{_lambda_.1} parent=5 // pred_check_branch
      %226 = sbr.rel (%p223) target = $region44
    $region43: #{_lambda_.1} parent=5 // pred_region
      %s227 = ssub.s32 %s12, 1
      %p228 = scmp.lt.s32.totalorder %s17, 1
      %s229 = scalar_select %p228, %s17, 1
      %s230 = smul.addr %s229, 10
      %s231 = smul.addr %s230, 8
      %s232 = scalar_lea.vmem %s0, %s231
      %p233 = pneg %p38
      %p234 = pneg %p35
      %p235 = pneg %p59
      %p236 = pneg %p56
      %p237 = pneg %p80
      %p238 = pneg %p77
      %p239 = scmp.lt.s32.totalorder %s17, 1
      %s240 = scalar_select %p239, %s17, 1
      %s241 = smul.addr %s240, 2
      %s242 = smul.addr %s241, 8
      %s243 = scalar_lea.vmem %s3, %s242
      %p244 = pneg %p106
      %p245 = pneg %p103
      %p246 = pneg %p127
      %p247 = pneg %p124
      %p248 = pneg %p148
      %p249 = pneg %p145
      %p250 = pneg %p174
      %p251 = pneg %p171
      %p252 = scmp.lt.s32.totalorder %s17, 1
      %s253 = scalar_select %p252, %s17, 1
      %s254 = smul.addr %s253, 2
      %s255 = smul.addr %s254, 8
      %s256 = scalar_lea.vmem %s6, %s255
      %p257 = scmp.lt.s32.totalorder %s17, 1
      %s258 = scalar_select %p257, %s17, 1
      %s259 = smul.addr %s258, 10
      %s260 = smul.addr %s259, 8
      %s261 = scalar_lea.vmem %s0, %s260
      %p262 = scmp.lt.s32.totalorder %s17, 1
      %s263 = scalar_select %p262, %s17, 1
      %s264 = smul.addr %s263, 2
      %s265 = smul.addr %s264, 8
      %s266 = scalar_lea.vmem %s3, %s265
      %p267 = scmp.lt.s32.totalorder %s17, 1
      %s268 = scalar_select %p267, %s17, 1
      %s269 = smul.addr %s268, 2
      %s270 = smul.addr %s269, 8
      %s271 = scalar_lea.vmem %s6, %s270
      %v272 = vld [vmem:[%s266] sm:$0xff]
      %v273 = vld [vmem:[%s266 + $0x8] sm:$0xff]
      %v274 = vld [vmem:[%s4] sm:$0xff]
      %v275 = vld [vmem:[%s4 + $0x8] sm:$0xff]
      %v276 = vld [vmem:[%s4 + $0x10] sm:$0xff]
      %v277 = vld [vmem:[%s4 + $0x18] sm:$0xff]
      %vm278 = vcmask 130048
      %v280 = vsel %vm278, %v274, 0
      %v283 = vsel %vm278, %v275, 0
      %v286 = vsel %vm278, %v276, 0
      %v289 = vsel %vm278, %v277, 0
      %291 = vmatpush.msra.mxu0 0.0
      %292 = vmatpush.msra.mxu0 0.0
      %293 = vmatpush.msra.mxu0 0.0
      %294 = vmatpush.msra.mxu0 0.0
      %295 = vmatpush.msra.mxu0 0.0
      %296 = vmatpush.msra.mxu0 0.0
      %297 = vmatpush.msra.mxu0 0.0
      %298 = vmatpush.msra.mxu0 0.0
      %299 = vmatpush.msra.mxu0 0.0
      %300 = vmatpush.msra.mxu0 0.0
      %301 = vmatpush.msra.mxu0 0.0
      %302 = vmatpush.msra.mxu0 0.0
      %303 = vmatpush.msra.mxu0 0.0
      %304 = vmatpush.msra.mxu0 0.0
      %305 = vmatpush.msra.mxu0 %v273
      %306 = vmatpush.msra.mxu0 %v272
      %307 = vmatmul.f32.gmra.mxu0 %v280
      %v308 = vpop.f32.mrf.mxu0
      %v309 = vadd.f32 0.0, %v308
      %310 = vmatmul.f32.gmra.mxu0 %v283
      %v311 = vpop.f32.mrf.mxu0
      %v312 = vadd.f32 0.0, %v311
      %313 = vmatmul.f32.gmra.mxu0 %v286
      %v314 = vpop.f32.mrf.mxu0
      %v315 = vadd.f32 0.0, %v314
      %316 = vmatmul.f32.gmra.mxu0 %v289
      %v317 = vpop.f32.mrf.mxu0
      %v318 = vadd.f32 0.0, %v317
      %319 = vdwg.mxu0
      %v320 = vmax.f32 %v309, 0.0
      %v321 = vmax.f32 %v312, 0.0
      %v322 = vmax.f32 %v315, 0.0
      %v323 = vmax.f32 %v318, 0.0
      %v324 = vld [vmem:[%s5] sm:$0xff]
      %vm325 = vcmask 261120
      %v327 = vsel %vm325, %v324, 0
      %329 = vmatpush.msra.mxu0 0.0
      %330 = vmatpush.msra.mxu0 0.0
      %331 = vmatpush.msra.mxu0 0.0
      %332 = vmatpush.msra.mxu0 0.0
      %333 = vmatpush.msra.mxu0 0.0
      %334 = vmatpush.msra.mxu0 0.0
      %335 = vmatpush.msra.mxu0 0.0
      %336 = vmatpush.msra.mxu0 0.0
      %337 = vmatpush.msra.mxu0 0.0
      %338 = vmatpush.msra.mxu0 0.0
      %339 = vmatpush.msra.mxu0 0.0
      %340 = vmatpush.msra.mxu0 0.0
      %341 = vmatpush.msra.mxu0 %v323
      %342 = vmatpush.msra.mxu0 %v322
      %343 = vmatpush.msra.mxu0 %v321
      %344 = vmatpush.msra.mxu0 %v320
      %345 = vmatmul.f32.gmra.mxu0 %v327
      %v346 = vpop.f32.mrf.mxu0
      %v347 = vadd.f32 0.0, %v346
      %348 = vdwg.mxu0
      %v349 = vld [vmem:[%s1] sm:$0xff]
      %v350 = vld [vmem:[%s261] sm:$0xff]
      %v351 = vld [vmem:[%s261 + $0x8] sm:$0xff]
      %v352 = vld [vmem:[%s261 + $0x10] sm:$0xff]
      %v353 = vld [vmem:[%s261 + $0x18] sm:$0xff]
      %v354 = vld [vmem:[%s261 + $0x20] sm:$0xff]
      %v355 = vld [vmem:[%s261 + $0x28] sm:$0xff]
      %v356 = vld [vmem:[%s261 + $0x30] sm:$0xff]
      %v357 = vld [vmem:[%s261 + $0x38] sm:$0xff]
      %v358 = vld [vmem:[%s261 + $0x40] sm:$0xf]
      %v359 = vld [vmem:[%s261 + $0x48] sm:$0xf]
      %v360 = vld [vmem:[%s2] sm:$0xff]
      %362 = vset.pattern.permute.xlu0 0
      %363 = vperm.xlu0 %362, %v360
      %v364 = vpop.permute.xlu0 %363
      %vm366 = vcmask 293888
      %v368 = vsel %vm366, %v349, 0
      %vm370 = vcmask 1043456
      %v372 = vsel %vm370, %v358, 0
      %v375 = vsel %vm370, %v359, 0
      %377 = vmatpush.msra.mxu0 0.0
      %378 = vmatpush.msra.mxu0 0.0
      %379 = vmatpush.msra.mxu0 0.0
      %380 = vmatpush.msra.mxu0 0.0
      %381 = vmatpush.msra.mxu0 0.0
      %382 = vmatpush.msra.mxu0 0.0
      %383 = vmatpush.msra.mxu0 0.0
      %384 = vmatpush.msra.mxu0 0.0
      %385 = vmatpush.msra.mxu0 0.0
      %386 = vmatpush.msra.mxu0 0.0
      %387 = vmatpush.msra.mxu0 0.0
      %388 = vmatpush.msra.mxu0 %v372
      %389 = vmatpush.msra.mxu0 %v356
      %390 = vmatpush.msra.mxu0 %v354
      %391 = vmatpush.msra.mxu0 %v352
      %392 = vmatpush.msra.mxu0 %v350
      %393 = vmatmul.f32.gmra.mxu0 %v368
      %v394 = vpop.f32.mrf.mxu0
      %v395 = vadd.f32 %v364, %v394
      %396 = vdwg.mxu0
      %397 = vmatpush.msra.mxu0 0.0
      %398 = vmatpush.msra.mxu0 0.0
      %399 = vmatpush.msra.mxu0 0.0
      %400 = vmatpush.msra.mxu0 0.0
      %401 = vmatpush.msra.mxu0 0.0
      %402 = vmatpush.msra.mxu0 0.0
      %403 = vmatpush.msra.mxu0 0.0
      %404 = vmatpush.msra.mxu0 0.0
      %405 = vmatpush.msra.mxu0 0.0
      %406 = vmatpush.msra.mxu0 0.0
      %407 = vmatpush.msra.mxu0 0.0
      %408 = vmatpush.msra.mxu0 %v375
      %409 = vmatpush.msra.mxu0 %v357
      %410 = vmatpush.msra.mxu0 %v355
      %411 = vmatpush.msra.mxu0 %v353
      %412 = vmatpush.msra.mxu0 %v351
      %413 = vmatmul.f32.gmra.mxu0 %v368
      %v414 = vpop.f32.mrf.mxu0
      %v415 = vadd.f32 %v364, %v414
      %416 = vdwg.mxu0
      %418 = vset.pattern.permute.xlu0 0
      %419 = vperm.xlu0 %418, %v347
      %v420 = vpop.permute.xlu0 %419
      %v422 = vadd.f32 %v395, %v420
      %v423 = vadd.f32 %v415, %v420
      %424 = vst [vmem:[%s271] sm:$0xff] %v422
      %425 = vst [vmem:[%s271 + $0x8] sm:$0xff] %v423
      %p426 = scmp.lt.s32.totalorder %s17, 1
      %s427 = scalar_select %p426, %s17, 1
      %s428 = smul.addr %s427, 2
      %s429 = smul.addr %s428, 8
      %s430 = scalar_lea.vmem %s6, %s429
      // Predicated region
      $region45: #{_lambda_.1} parent=43 // pred_check
        %p431 = pneg %p171
      $region46: #{_lambda_.1} parent=43 // pred_check_branch
        %433 = sbr.rel (%p431) target = $region48
      $region47: #{_lambda_.1} parent=43 // pred_region
        _
      $region48: #{_lambda_.1} parent=43 // pred_fallthru
        _
    $region44: #{_lambda_.1} parent=5 // pred_fallthru
      _
    %p434 = scmp.le.s32.totalorder 2, %s12
    // Predicated region
    $region49: #{_lambda_.1} parent=5 // pred_check
      %p435 = pneg %p434
    $region50: #{_lambda_.1} parent=5 // pred_check_branch
      %437 = sbr.rel (%p435) target = $region52
    $region51: #{_lambda_.1} parent=5 // pred_region
      %s438 = ssub.s32 %s12, 2
      // Predicated region
      $region53: #{_lambda_.1} parent=51 // pred_check
        %p439 = pneg %p177
      $region54: #{_lambda_.1} parent=51 // pred_check_branch
        %441 = sbr.rel (%p439) target = $region56
      $region55: #{_lambda_.1} parent=51 // pred_region
        %p442 = scmp.lt.s32.totalorder %s18, 1
        %s443 = scalar_select %p442, %s18, 1
        %s444 = smul.addr %s443, 2
        %s445 = smul.addr %s444, 8
        %s446 = scalar_lea.vmem %s6, %s445
      $region56: #{_lambda_.1} parent=51 // pred_fallthru
        _
    $region52: #{_lambda_.1} parent=5 // pred_fallthru
      _
  $region6: #{_lambda_.1} parent=0 // loop_footer
    %s16 = sadd.s32 1, %s12
  $region7: #{_lambda_.1} parent=0 // loop_footer_branch
    %11 = sbr.rel target = $region3
  $region8: #{_lambda_.1} parent=0 // loop_exit
    _

</llo_original>
